<compile_context>
chip_gen: v5e
topology: v5e:2x2
jax: 0.10.0
libtpu: 0.0.40
codegen_flags: <defaults>
</compile_context>

<pallas_src>
import jax
import jax.numpy as jnp
from jax.experimental import pallas as pl
from jax.experimental.pallas import tpu as pltpu


def _fc_kernel(x_ref, wt_ref, o_ref):
    # x_ref: (TM, C), wt_ref: (C, O), o_ref: (TM, O).
    # Single MXU matmul per grid step, contracting the LAST lhs dim.
    o_ref[...] = jnp.dot(
        x_ref[...], wt_ref[...], preferred_element_type=jnp.float32
    ).astype(o_ref.dtype)


def _choose_m_tile(M, C, O, itemsize, vmem_budget=16 << 20):
    """Largest M tile whose per-step footprint fits the VMEM budget.

    Per-step footprint ~ double-buffered x block + double-buffered out block +
    resident (C, O) weight.  Budget leaves headroom under v7x's 32 MiB scoped
    default; v5e/v6e (128 MiB) have more slack.
    """
    def fits(tm):
        return (2 * tm * C + 2 * tm * O + C * O) * itemsize <= vmem_budget

    if fits(M):
        return M, 1                        # single grid step: best on 1-TC chips
    tm = max(8, (M // 2) // 8 * 8)
    while tm >= 8:
        if M % tm == 0 and fits(tm):
            return tm, M // tm
        tm -= 8
    return M, 1                            # fallback: full block, rely on vmem limit


def fc_transpose(x, weight=None, only_transpose=False):
    """FCTranspose forward.  x: (B, C, T); weight: (O, C) (nn.Linear layout)."""
    B, C, T = x.shape

    if only_transpose:
        # Pure relayout: XLA's transpose emitter beats a Pallas copy kernel
        # here (no compute to fuse; kernel launch would be pure overhead).
        return jnp.transpose(x, (0, 2, 1))

    if weight is None:
        raise ValueError("weight is required when only_transpose=False")
    O = weight.shape[0]

    # Orientation handled once in the wrapper (ideally fused upstream with the
    # conv backbone's output layout): lane-dense (B*T, C) lhs, (C, O) rhs.
    # TODO(synk): persist w_t at module init instead of per call (jit constant-folds it).
    x2 = jnp.transpose(x, (0, 2, 1)).reshape(B * T, C)
    w_t = jnp.transpose(weight)

    M = B * T
    itemsize = x.dtype.itemsize
    TM, G = _choose_m_tile(M, C, O, itemsize)

    cost = pl.CostEstimate(
        flops=2 * M * C * O,
        transcendentals=0,
        bytes_accessed=(M * C + C * O + M * O) * itemsize,
    )

    y = pl.pallas_call(
        _fc_kernel,
        out_shape=jax.ShapeDtypeStruct((M, O), x.dtype),
        grid_spec=pltpu.PrefetchScalarGridSpec(
            num_scalar_prefetch=0,
            grid=(G,),
            in_specs=[
                pl.BlockSpec((TM, C), lambda g: (g, 0)),
                # Constant index_map: weight tile DMA'd once, reused across steps.
                pl.BlockSpec((C, O), lambda g: (0, 0)),
            ],
            out_specs=pl.BlockSpec((TM, O), lambda g: (g, 0)),
        ),
        compiler_params=pltpu.CompilerParams(
            dimension_semantics=("parallel",),
            vmem_limit_bytes=32 * 1024 * 1024,
        ),
        cost_estimate=cost,
    )(x2, w_t)

    # Splitting the leading dim of the row-major (M, O) result is a free
    # metadata reshape back to (B, T, O).
    return y.reshape(B, T, O)


if __name__ == "__main__":
    # Small shapes consistent with the module: batch=2, in_channels=32,
    # seq len T=16, out_channels=64.
    B, C, T, O = 2, 32, 16, 64

    key = jax.random.PRNGKey(0)
    kx, kw = jax.random.split(key)

    x = jax.random.normal(kx, (B, C, T), dtype=jnp.float32)

    # Deterministic nn.Linear-style init: U(-1/sqrt(in), 1/sqrt(in)), (O, C).
    bound = 1.0 / (C ** 0.5)
    weight = jax.random.uniform(kw, (O, C), dtype=jnp.float32,
                                minval=-bound, maxval=bound)

    # fc path (Pallas kernel)
    y = fc_transpose(x, weight, only_transpose=False)
    y = jax.block_until_ready(y)
    y_ref = jnp.einsum("bct,oc->bto", x, weight)
    assert y.shape == (B, T, O)
    assert jnp.allclose(y, y_ref, atol=1e-5, rtol=1e-5)

    # only_transpose path (pure relayout; handled by XLA per review)
    yt = fc_transpose(x, only_transpose=True)
    yt = jax.block_until_ready(yt)
    assert yt.shape == (B, T, C)
    assert jnp.allclose(yt, jnp.transpose(x, (0, 2, 1)))

    print("KERNEL_OK")
</pallas_src>

<mosaic_0001>
module attributes {stable_mosaic.version = 11 : i64} {
  func.func @_fc_kernel(%arg0: i32, %arg1: memref<32x32xf32, #tpu.memory_space<vmem>>, %arg2: memref<32x64xf32, #tpu.memory_space<vmem>>, %arg3: memref<32x64xf32, #tpu.memory_space<vmem>>) attributes {dimension_semantics = [#tpu.dimension_semantics<parallel>], iteration_bounds = array<i64: 1>, scalar_prefetch = 0 : i64, scratch_operands = 0 : i64, tpu.core_type = #tpu.core_type<tc>, window_params = [{transform_indices = @transform_0, window_bounds = array<i64: 32, 32>}, {pipeline_mode = #tpu.pipeline_mode<synchronous>, transform_indices = @transform_1, window_bounds = array<i64: 32, 64>}, {transform_indices = @transform_2, window_bounds = array<i64: 32, 64>}]} {
    %c0 = arith.constant 0 : index
    %c0_0 = arith.constant 0 : index
    %0 = vector.load %arg1[%c0, %c0_0] : memref<32x32xf32, #tpu.memory_space<vmem>>, vector<32x32xf32>
    %c0_1 = arith.constant 0 : index
    %c0_2 = arith.constant 0 : index
    %1 = vector.load %arg2[%c0_1, %c0_2] : memref<32x64xf32, #tpu.memory_space<vmem>>, vector<32x64xf32>
    %cst = arith.constant dense<0.000000e+00> : vector<32x64xf32>
    %2 = tpu.matmul %0, %1, %cst {dimension_numbers = #tpu.dot_dimension_numbers<[1], [0], [0], [1], [0, 0, 1, 1], [], []>} : vector<32x32xf32>, vector<32x64xf32>, vector<32x64xf32> -> vector<32x64xf32>
    %c0_3 = arith.constant 0 : index
    %c0_4 = arith.constant 0 : index
    %3 = vector.load %arg3[%c0_3, %c0_4] : memref<32x64xf32, #tpu.memory_space<vmem>>, vector<32x64xf32>
    tpu.vector_store %arg3[%c0_3, %c0_4], %2 {strides = array<i32>} : memref<32x64xf32, #tpu.memory_space<vmem>>, vector<32x64xf32>,
    return
  }
  func.func @transform_0(%arg0: i32) -> (i32, i32) {
    %c0_i32 = arith.constant 0 : i32
    %c0_i32_0 = arith.constant 0 : i32
    return %arg0, %c0_i32 : i32, i32
  }
  func.func @transform_1(%arg0: i32) -> (i32, i32) {
    %c0_i32 = arith.constant 0 : i32
    %c0_i32_0 = arith.constant 0 : i32
    %c0_i32_1 = arith.constant 0 : i32
    return %c0_i32, %c0_i32_0 : i32, i32
  }
  func.func @transform_2(%arg0: i32) -> (i32, i32) {
    %c0_i32 = arith.constant 0 : i32
    %c0_i32_0 = arith.constant 0 : i32
    return %arg0, %c0_i32 : i32, i32
  }
}

</mosaic_0001>

<llo_original>
// kernel: tpu_custom_call.1
$region0: #{tpu_custom_call.1}
  #allocation0 [shape = 'u32[]', space=smem, size = 0x4, offset = 0x4, fixed_abs, tag = 'smem constant byte address 0x4 - core index']
  #allocation1 [shape = 'u32[72,128]{1,0:T(1,128)}', space=vmem, size = 0x9000, scoped, tag = 'internal scratch']
  %s0 = inlined_call_operand.hbm [shape: f32[32,32], index: 0, kind: input, shape index: {}]
  %s1 = inlined_call_operand.hbm [shape: f32[32,64], index: 1, kind: input, shape index: {}]
  %s2 = inlined_call_operand.hbm [shape: f32[32,64], index: 2, kind: output, shape index: {}]
  %s3 = sld [smem:[#allocation0]]
  $region26: #{tpu_custom_call.1} parent=0
    _
  %s5 = ssub.s32 1, %s3
  %s6 = scalar_select 0, %s5, %s3
  $region1: #{tpu_custom_call.1} parent=0
    #allocation2 [shape = 'u8[16384]{0}', space=vmem, size = 0x4000, scoped, tag = 'input window, operand 0, single buffered']
    #allocation3 [shape = 's32[1]{0}', space=sflag, size = 0x4, scoped, tag = 'scoped memory for tpu_custom_call.1']
    #allocation4 [shape = 's32[1]{0}', space=sflag, size = 0x4, scoped, tag = 'scoped memory for tpu_custom_call.1']
    #allocation5 [shape = 'u8[16384]{0}', space=vmem, size = 0x4000, scoped, tag = 'input window, operand 1, single buffered']
    #allocation6 [shape = 's32[1]{0}', space=sflag, size = 0x4, scoped, tag = 'scoped memory for tpu_custom_call.1']
    #allocation7 [shape = 'u8[16384]{0}', space=vmem, size = 0x4000, scoped, tag = 'output window, operand 0, single buffered']
    %7 = vsyncpa [#allocation3], 0
    %8 = vsyncpa [#allocation6], 0
    %9 = vsyncpa [#allocation4], 0
    // Predicated region
    $region2: #{tpu_custom_call.1} parent=1 // pred_check
      _
    $region3: #{tpu_custom_call.1} parent=1 // pred_check_branch
      %11 = sbr.rel (0) target = $region5
    $region4: #{tpu_custom_call.1} parent=1 // pred_region
      %13 = vsyncadd [#allocation3], 0
      %s14 = sshll.u32 %s0, 4
      %s15 = int_to_ptr.hbm [resolvable:$true] %s14
      %s16 = sshll.u32 [#allocation2], 4
      %s17 = int_to_ptr.vmem [resolvable:$true] %s16
      %22 = dma.hbm_to_vmem [thread:$0]  %s15, 512, %s17, [#allocation3], 128, 128, 8
    $region5: #{tpu_custom_call.1} parent=1 // pred_fallthru
      _
    // Predicated region
    $region6: #{tpu_custom_call.1} parent=1 // pred_check
      _
    $region7: #{tpu_custom_call.1} parent=1 // pred_check_branch
      %24 = sbr.rel (0) target = $region9
    $region8: #{tpu_custom_call.1} parent=1 // pred_region
      %26 = vsyncadd [#allocation6], 0
      %s27 = sshll.u32 %s1, 4
      %s28 = int_to_ptr.hbm [resolvable:$true] %s27
      %s29 = sshll.u32 [#allocation5], 4
      %s30 = int_to_ptr.vmem [resolvable:$true] %s29
      %35 = dma.hbm_to_vmem [thread:$0]  %s28, 512, %s30, [#allocation6], 128, 128, 8
    $region9: #{tpu_custom_call.1} parent=1 // pred_fallthru
      _
    // Predicated region
    $region10: #{tpu_custom_call.1} parent=1 // pred_check
      _
    $region11: #{tpu_custom_call.1} parent=1 // pred_check_branch
      %37 = sbr.rel (0) target = $region13
    $region12: #{tpu_custom_call.1} parent=1 // pred_region
      %39 = dma.done [#allocation3], 512
    $region13: #{tpu_custom_call.1} parent=1 // pred_fallthru
      _
    // Predicated region
    $region14: #{tpu_custom_call.1} parent=1 // pred_check
      _
    $region15: #{tpu_custom_call.1} parent=1 // pred_check_branch
      %41 = sbr.rel (0) target = $region17
    $region16: #{tpu_custom_call.1} parent=1 // pred_region
      %43 = dma.done [#allocation6], 512
    $region17: #{tpu_custom_call.1} parent=1 // pred_fallthru
      _
    %v44 = vld [vmem:[#allocation2] sm:$0xff]
    %v45 = vld [vmem:[#allocation2 + $0x8] sm:$0xff]
    %v46 = vld [vmem:[#allocation2 + $0x10] sm:$0xff]
    %v47 = vld [vmem:[#allocation2 + $0x18] sm:$0xff]
    %v48 = vld [vmem:[#allocation5] sm:$0xff]
    %v49 = vld [vmem:[#allocation5 + $0x8] sm:$0xff]
    %v50 = vld [vmem:[#allocation5 + $0x10] sm:$0xff]
    %v51 = vld [vmem:[#allocation5 + $0x18] sm:$0xff]
    %vm52 = vcmask 261120
    %v54 = vsel %vm52, %v44, 0
    %v57 = vsel %vm52, %v45, 0
    %v60 = vsel %vm52, %v46, 0
    %v63 = vsel %vm52, %v47, 0
    %65 = vmatpush.msra.mxu0 0.0
    %66 = vmatpush.msra.mxu0 0.0
    %67 = vmatpush.msra.mxu0 0.0
    %68 = vmatpush.msra.mxu0 0.0
    %69 = vmatpush.msra.mxu0 0.0
    %70 = vmatpush.msra.mxu0 0.0
    %71 = vmatpush.msra.mxu0 0.0
    %72 = vmatpush.msra.mxu0 0.0
    %73 = vmatpush.msra.mxu0 0.0
    %74 = vmatpush.msra.mxu0 0.0
    %75 = vmatpush.msra.mxu0 0.0
    %76 = vmatpush.msra.mxu0 0.0
    %77 = vmatpush.msra.mxu0 %v51
    %78 = vmatpush.msra.mxu0 %v50
    %79 = vmatpush.msra.mxu0 %v49
    %80 = vmatpush.msra.mxu0 %v48
    %81 = vmatmul.f32.gmra.mxu0 %v54
    %v82 = vpop.f32.mrf.mxu0
    %v83 = vadd.f32 0.0, %v82
    %84 = vmatmul.f32.gmra.mxu0 %v57
    %v85 = vpop.f32.mrf.mxu0
    %v86 = vadd.f32 0.0, %v85
    %87 = vmatmul.f32.gmra.mxu0 %v60
    %v88 = vpop.f32.mrf.mxu0
    %v89 = vadd.f32 0.0, %v88
    %90 = vmatmul.f32.gmra.mxu0 %v63
    %v91 = vpop.f32.mrf.mxu0
    %v92 = vadd.f32 0.0, %v91
    %93 = vdwg.mxu0
    %vm94 = vcmask 523264
    %95 = vst.msk [vmem:[#allocation7] sm:$0xff] %vm94, %v83
    %96 = vst.msk [vmem:[#allocation7 + $0x8] sm:$0xff] %vm94, %v86
    %97 = vst.msk [vmem:[#allocation7 + $0x10] sm:$0xff] %vm94, %v89
    %98 = vst.msk [vmem:[#allocation7 + $0x18] sm:$0xff] %vm94, %v92
    // Predicated region
    $region18: #{tpu_custom_call.1} parent=1 // pred_check
      _
    $region19: #{tpu_custom_call.1} parent=1 // pred_check_branch
      %100 = sbr.rel (0) target = $region21
    $region20: #{tpu_custom_call.1} parent=1 // pred_region
      %102 = vsyncadd [#allocation4], 0
      %s103 = sshll.u32 [#allocation7], 4
      %s104 = int_to_ptr.vmem [resolvable:$true] %s103
      %s105 = sshll.u32 %s2, 4
      %s106 = int_to_ptr.hbm [resolvable:$true] %s105
      %111 = dma.vmem_to_hbm [thread:$0]  %s104, 512, %s106, [#allocation4], 128, 128, 8
    $region21: #{tpu_custom_call.1} parent=1 // pred_fallthru
      _
    // Predicated region
    $region22: #{tpu_custom_call.1} parent=1 // pred_check
      _
    $region23: #{tpu_custom_call.1} parent=1 // pred_check_branch
      %113 = sbr.rel (0) target = $region25
    $region24: #{tpu_custom_call.1} parent=1 // pred_region
      %115 = dma.done [#allocation4], 512
    $region25: #{tpu_custom_call.1} parent=1 // pred_fallthru
      _
    %116 = vsyncpa [#allocation3], 1
    %117 = vsyncpa [#allocation6], 1
    %118 = vsyncpa [#allocation4], 1

</llo_original>
